<compile_context>
chip_gen: v6e
topology: v6e:2x2x1
jax: 0.10.0
libtpu: 0.0.40
codegen_flags: <defaults>
</compile_context>

<pallas_src>
import jax
import jax.numpy as jnp
from jax.experimental import pallas as pl
from jax.experimental.pallas import tpu as pltpu

D_IN, D_HID, D_OUT = 128, 256, 512


def mlp_kernel(x_ref, w_ref, b_ref, o_ref):
    # (tm, 128) bf16 @ (128, 512) bf16 -> f32 accumulate on the MXU, + f32 bias.
    acc = jnp.dot(x_ref[...], w_ref[...], preferred_element_type=jnp.float32)
    o_ref[...] = (acc + b_ref[...]).astype(o_ref.dtype)


def mlp_forward(x, w1, b1, w2, b2, *, tm=512):
    """Forward pass of MlpModel: (x @ w1 + b1) @ w2 + b2.

    x:  (B, 128) float32
    w1: (128, 256), b1: (1, 256), w2: (256, 512), b2: (1, 512)
    Returns (B, 512) float32.
    """
    B = x.shape[0]

    # --- algebraic fusion (done once in the wrapper, f32) ---------------------
    w1f = w1.astype(jnp.float32)
    w2f = w2.astype(jnp.float32)
    w_fused = (w1f @ w2f).astype(jnp.bfloat16)                       # (128, 512)
    b_fused = (b1.astype(jnp.float32) @ w2f) + b2.astype(jnp.float32)  # (1, 512) f32

    # --- bf16 activations for the MXU -----------------------------------------
    x_bf16 = x.astype(jnp.bfloat16)

    # --- pad batch to a multiple of the row tile (no hard assert) -------------
    grid_m = pl.cdiv(B, tm)
    B_pad = grid_m * tm
    if B_pad != B:
        x_bf16 = jnp.pad(x_bf16, ((0, B_pad - B), (0, 0)))

    out = pl.pallas_call(
        mlp_kernel,
        out_shape=jax.ShapeDtypeStruct((B_pad, D_OUT), jnp.float32),
        grid_spec=pltpu.PrefetchScalarGridSpec(
            num_scalar_prefetch=0,
            grid=(grid_m,),
            in_specs=[
                pl.BlockSpec((tm, D_IN), lambda i: (i, 0)),       # x tile (streamed)
                pl.BlockSpec((D_IN, D_OUT), lambda i: (0, 0)),    # fused W (resident)
                pl.BlockSpec((1, D_OUT), lambda i: (0, 0)),       # fused bias (resident)
            ],
            out_specs=pl.BlockSpec((tm, D_OUT), lambda i: (i, 0)),  # lane-dense (512)
        ),
        compiler_params=pltpu.CompilerParams(
            dimension_semantics=("parallel",)),
    )(x_bf16, w_fused, b_fused)

    if B_pad != B:
        out = out[:B]
    return out


def init_params(key):
    # Deterministic init mimicking nn.Linear default: U(-1/sqrt(fan_in), 1/sqrt(fan_in))
    k1, k2, k3, k4 = jax.random.split(key, 4)
    bound1 = 1.0 / jnp.sqrt(D_IN)
    bound2 = 1.0 / jnp.sqrt(D_HID)
    w1 = jax.random.uniform(k1, (D_IN, D_HID), jnp.float32, -bound1, bound1)
    b1 = jax.random.uniform(k2, (1, D_HID), jnp.float32, -bound1, bound1)
    w2 = jax.random.uniform(k3, (D_HID, D_OUT), jnp.float32, -bound2, bound2)
    b2 = jax.random.uniform(k4, (1, D_OUT), jnp.float32, -bound2, bound2)
    return w1, b1, w2, b2


if __name__ == "__main__":
    key = jax.random.PRNGKey(0)
    kx, kp = jax.random.split(key)
    B = 8  # small example batch; padded internally to the row tile
    x = jax.random.normal(kx, (B, D_IN), jnp.float32)
    w1, b1, w2, b2 = init_params(kp)

    out = mlp_forward(x, w1, b1, w2, b2)
    out = jax.block_until_ready(out)

    # Reference check against plain f32 two-stage JAX (tolerance loosened for
    # bf16 MXU operands + W1@W2 reassociation).
    ref = (x @ w1 + b1) @ w2 + b2
    assert out.shape == (B, D_OUT)
    assert jnp.allclose(out, ref, atol=2e-2, rtol=2e-2), float(
        jnp.max(jnp.abs(out - ref)))
    print("KERNEL_OK")
</pallas_src>

<mosaic_0001>
module attributes {stable_mosaic.version = 11 : i64} {
  func.func @mlp_kernel(%arg0: i32, %arg1: memref<512x128xbf16, #tpu.memory_space<vmem>>, %arg2: memref<128x512xbf16, #tpu.memory_space<vmem>>, %arg3: memref<1x512xf32, #tpu.memory_space<vmem>>, %arg4: memref<512x512xf32, #tpu.memory_space<vmem>>) attributes {dimension_semantics = [#tpu.dimension_semantics<parallel>], iteration_bounds = array<i64: 1>, scalar_prefetch = 0 : i64, scratch_operands = 0 : i64, tpu.core_type = #tpu.core_type<tc>, window_params = [{transform_indices = @transform_0, window_bounds = array<i64: 512, 128>}, {pipeline_mode = #tpu.pipeline_mode<synchronous>, transform_indices = @transform_1, window_bounds = array<i64: 128, 512>}, {pipeline_mode = #tpu.pipeline_mode<synchronous>, transform_indices = @transform_2, window_bounds = array<i64: 1, 512>}, {transform_indices = @transform_3, window_bounds = array<i64: 512, 512>}]} {
    %c0 = arith.constant 0 : index
    %c0_0 = arith.constant 0 : index
    %0 = vector.load %arg1[%c0, %c0_0] : memref<512x128xbf16, #tpu.memory_space<vmem>>, vector<512x128xbf16>
    %c0_1 = arith.constant 0 : index
    %c0_2 = arith.constant 0 : index
    %1 = vector.load %arg2[%c0_1, %c0_2] : memref<128x512xbf16, #tpu.memory_space<vmem>>, vector<128x512xbf16>
    %cst = arith.constant dense<0.000000e+00> : vector<512x512xf32>
    %2 = tpu.matmul %0, %1, %cst {dimension_numbers = #tpu.dot_dimension_numbers<[1], [0], [0], [1], [0, 0, 1, 1], [], []>} : vector<512x128xbf16>, vector<128x512xbf16>, vector<512x512xf32> -> vector<512x512xf32>
    %c0_3 = arith.constant 0 : index
    %c0_4 = arith.constant 0 : index
    %3 = vector.load %arg3[%c0_3, %c0_4] : memref<1x512xf32, #tpu.memory_space<vmem>>, vector<1x512xf32>
    %4 = vector.broadcast %3 : vector<1x512xf32> to vector<512x512xf32>
    %5 = arith.addf %2, %4 : vector<512x512xf32>
    %c0_5 = arith.constant 0 : index
    %c0_6 = arith.constant 0 : index
    %6 = vector.load %arg4[%c0_5, %c0_6] : memref<512x512xf32, #tpu.memory_space<vmem>>, vector<512x512xf32>
    tpu.vector_store %arg4[%c0_5, %c0_6], %5 {strides = array<i32>} : memref<512x512xf32, #tpu.memory_space<vmem>>, vector<512x512xf32>,
    return
  }
  func.func @transform_0(%arg0: i32) -> (i32, i32) {
    %c0_i32 = arith.constant 0 : i32
    %c0_i32_0 = arith.constant 0 : i32
    return %arg0, %c0_i32 : i32, i32
  }
  func.func @transform_1(%arg0: i32) -> (i32, i32) {
    %c0_i32 = arith.constant 0 : i32
    %c0_i32_0 = arith.constant 0 : i32
    %c0_i32_1 = arith.constant 0 : i32
    return %c0_i32, %c0_i32_0 : i32, i32
  }
  func.func @transform_2(%arg0: i32) -> (i32, i32) {
    %c0_i32 = arith.constant 0 : i32
    %c0_i32_0 = arith.constant 0 : i32
    %c0_i32_1 = arith.constant 0 : i32
    return %c0_i32, %c0_i32_0 : i32, i32
  }
  func.func @transform_3(%arg0: i32) -> (i32, i32) {
    %c0_i32 = arith.constant 0 : i32
    %c0_i32_0 = arith.constant 0 : i32
    return %arg0, %c0_i32 : i32, i32
  }
}

</mosaic_0001>

<llo_original>
// kernel: tpu_custom_call.1
$region0: #{tpu_custom_call.1}
  #allocation0 [shape = 'u32[]', space=smem, size = 0x4, offset = 0x4, fixed_abs, tag = 'smem constant byte address 0x4 - core index']
  #allocation1 [shape = 'u32[144,128]{1,0:T(1,128)}', space=vmem, size = 0x12000, scoped, tag = 'internal scratch']
  %s0 = inlined_call_operand.hbm [shape: bf16[512,128], index: 0, kind: input, shape index: {}]
  %s1 = inlined_call_operand.hbm [shape: bf16[128,512], index: 1, kind: input, shape index: {}]
  %s2 = inlined_call_operand.hbm [shape: f32[1,512], index: 2, kind: input, shape index: {}]
  %s3 = inlined_call_operand.hbm [shape: f32[512,512], index: 3, kind: output, shape index: {}]
  %s4 = sld [smem:[#allocation0]]
  $region34: #{tpu_custom_call.1} parent=0
    _
  %s6 = ssub.s32 1, %s4
  %s7 = scalar_select 0, %s6, %s4
  $region1: #{tpu_custom_call.1} parent=0
    #allocation2 [shape = 'u8[131072]{0}', space=vmem, size = 0x20000, scoped, tag = 'input window, operand 0, single buffered']
    #allocation3 [shape = 's32[1]{0}', space=sflag, size = 0x4, scoped, tag = 'scoped memory for tpu_custom_call.1']
    #allocation4 [shape = 's32[1]{0}', space=sflag, size = 0x4, scoped, tag = 'scoped memory for tpu_custom_call.1']
    #allocation5 [shape = 'u8[131072]{0}', space=vmem, size = 0x20000, scoped, tag = 'input window, operand 1, single buffered']
    #allocation6 [shape = 's32[1]{0}', space=sflag, size = 0x4, scoped, tag = 'scoped memory for tpu_custom_call.1']
    #allocation7 [shape = 'u8[2048]{0}', space=vmem, size = 0x800, scoped, tag = 'input window, operand 2, single buffered']
    #allocation8 [shape = 'u8[1048576]{0}', space=vmem, size = 0x100000, scoped, tag = 'output window, operand 0, single buffered']
    %8 = vsyncpa [#allocation3], 0
    %9 = vsyncpa [#allocation6], 0
    %10 = vsyncpa [#allocation4], 0
    // Predicated region
    $region2: #{tpu_custom_call.1} parent=1 // pred_check
      _
    $region3: #{tpu_custom_call.1} parent=1 // pred_check_branch
      %12 = sbr.rel (0) target = $region5
    $region4: #{tpu_custom_call.1} parent=1 // pred_region
      %s14 = ssub.s32 4096, 4096
      %15 = vsyncadd [#allocation3], %s14
      %s16 = sshll.u32 [#allocation2], 4
      %s17 = int_to_ptr.vmem [resolvable:$true] %s16
      %22 = dma.hbm_to_vmem [thread:$0]  %s0, 4096, %s17, [#allocation3], 64, 64, 4
    $region5: #{tpu_custom_call.1} parent=1 // pred_fallthru
      _
    // Predicated region
    $region6: #{tpu_custom_call.1} parent=1 // pred_check
      _
    $region7: #{tpu_custom_call.1} parent=1 // pred_check_branch
      %24 = sbr.rel (0) target = $region9
    $region8: #{tpu_custom_call.1} parent=1 // pred_region
      %s26 = ssub.s32 4096, 4096
      %27 = vsyncadd [#allocation6], %s26
      %s28 = sshll.u32 [#allocation5], 4
      %s29 = int_to_ptr.vmem [resolvable:$true] %s28
      %34 = dma.hbm_to_vmem [thread:$0]  %s1, 4096, %s29, [#allocation6], 256, 256, 16
    $region9: #{tpu_custom_call.1} parent=1 // pred_fallthru
      _
    // Predicated region
    $region10: #{tpu_custom_call.1} parent=1 // pred_check
      _
    $region11: #{tpu_custom_call.1} parent=1 // pred_check_branch
      %36 = sbr.rel (0) target = $region13
    $region12: #{tpu_custom_call.1} parent=1 // pred_region
      %s38 = ssub.s32 64, 64
      %39 = vsyncadd [#allocation6], %s38
      %s41 = sshll.u32 [#allocation7], 4
      %s42 = int_to_ptr.vmem [resolvable:$true] %s41
      %44 = dma.hbm_to_vmem [thread:$0]  %s2, 64, %s42, [#allocation6]
    $region13: #{tpu_custom_call.1} parent=1 // pred_fallthru
      _
    // Predicated region
    $region14: #{tpu_custom_call.1} parent=1 // pred_check
      _
    $region15: #{tpu_custom_call.1} parent=1 // pred_check_branch
      %46 = sbr.rel (0) target = $region17
    $region16: #{tpu_custom_call.1} parent=1 // pred_region
      %47 = dma.done [#allocation3], 4096
    $region17: #{tpu_custom_call.1} parent=1 // pred_fallthru
      _
    // Predicated region
    $region18: #{tpu_custom_call.1} parent=1 // pred_check
      _
    $region19: #{tpu_custom_call.1} parent=1 // pred_check_branch
      %49 = sbr.rel (0) target = $region21
    $region20: #{tpu_custom_call.1} parent=1 // pred_region
      %50 = dma.done [#allocation6], 4096
    $region21: #{tpu_custom_call.1} parent=1 // pred_fallthru
      _
    // Predicated region
    $region22: #{tpu_custom_call.1} parent=1 // pred_check
      _
    $region23: #{tpu_custom_call.1} parent=1 // pred_check_branch
      %52 = sbr.rel (0) target = $region25
    $region24: #{tpu_custom_call.1} parent=1 // pred_region
      %53 = dma.done [#allocation6], 64
    $region25: #{tpu_custom_call.1} parent=1 // pred_fallthru
      _
    %v55 = vld [vmem:[#allocation2] sm:$0xf]
    %v56 = vld [vmem:[#allocation2 + $0x4] sm:$0xf]
    %v57 = vld [vmem:[#allocation2 + $0x8] sm:$0xf]
    %v58 = vld [vmem:[#allocation2 + $0xc] sm:$0xf]
    %v59 = vld [vmem:[#allocation2 + $0x10] sm:$0xf]
    %v60 = vld [vmem:[#allocation2 + $0x14] sm:$0xf]
    %v61 = vld [vmem:[#allocation2 + $0x18] sm:$0xf]
    %v62 = vld [vmem:[#allocation2 + $0x1c] sm:$0xf]
    %v63 = vld [vmem:[#allocation2 + $0x20] sm:$0xf]
    %v64 = vld [vmem:[#allocation2 + $0x24] sm:$0xf]
    %v65 = vld [vmem:[#allocation2 + $0x28] sm:$0xf]
    %v66 = vld [vmem:[#allocation2 + $0x2c] sm:$0xf]
    %v67 = vld [vmem:[#allocation2 + $0x30] sm:$0xf]
    %v68 = vld [vmem:[#allocation2 + $0x34] sm:$0xf]
    %v69 = vld [vmem:[#allocation2 + $0x38] sm:$0xf]
    %v70 = vld [vmem:[#allocation2 + $0x3c] sm:$0xf]
    %v71 = vld [vmem:[#allocation2 + $0x40] sm:$0xf]
    %v72 = vld [vmem:[#allocation2 + $0x44] sm:$0xf]
    %v73 = vld [vmem:[#allocation2 + $0x48] sm:$0xf]
    %v74 = vld [vmem:[#allocation2 + $0x4c] sm:$0xf]
    %v75 = vld [vmem:[#allocation2 + $0x50] sm:$0xf]
    %v76 = vld [vmem:[#allocation2 + $0x54] sm:$0xf]
    %v77 = vld [vmem:[#allocation2 + $0x58] sm:$0xf]
    %v78 = vld [vmem:[#allocation2 + $0x5c] sm:$0xf]
    %v79 = vld [vmem:[#allocation2 + $0x60] sm:$0xf]
    %v80 = vld [vmem:[#allocation2 + $0x64] sm:$0xf]
    %v81 = vld [vmem:[#allocation2 + $0x68] sm:$0xf]
    %v82 = vld [vmem:[#allocation2 + $0x6c] sm:$0xf]
    %v83 = vld [vmem:[#allocation2 + $0x70] sm:$0xf]
    %v84 = vld [vmem:[#allocation2 + $0x74] sm:$0xf]
    %v85 = vld [vmem:[#allocation2 + $0x78] sm:$0xf]
    %v86 = vld [vmem:[#allocation2 + $0x7c] sm:$0xf]
    %v87 = vld [vmem:[#allocation2 + $0x80] sm:$0xf]
    %v88 = vld [vmem:[#allocation2 + $0x84] sm:$0xf]
    %v89 = vld [vmem:[#allocation2 + $0x88] sm:$0xf]
    %v90 = vld [vmem:[#allocation2 + $0x8c] sm:$0xf]
    %v91 = vld [vmem:[#allocation2 + $0x90] sm:$0xf]
    %v92 = vld [vmem:[#allocation2 + $0x94] sm:$0xf]
    %v93 = vld [vmem:[#allocation2 + $0x98] sm:$0xf]
    %v94 = vld [vmem:[#allocation2 + $0x9c] sm:$0xf]
    %v95 = vld [vmem:[#allocation2 + $0xa0] sm:$0xf]
    %v96 = vld [vmem:[#allocation2 + $0xa4] sm:$0xf]
    %v97 = vld [vmem:[#allocation2 + $0xa8] sm:$0xf]
    %v98 = vld [vmem:[#allocation2 + $0xac] sm:$0xf]
    %v99 = vld [vmem:[#allocation2 + $0xb0] sm:$0xf]
    %v100 = vld [vmem:[#allocation2 + $0xb4] sm:$0xf]
    %v101 = vld [vmem:[#allocation2 + $0xb8] sm:$0xf]
    %v102 = vld [vmem:[#allocation2 + $0xbc] sm:$0xf]
    %v103 = vld [vmem:[#allocation2 + $0xc0] sm:$0xf]
    %v104 = vld [vmem:[#allocation2 + $0xc4] sm:$0xf]
    %v105 = vld [vmem:[#allocation2 + $0xc8] sm:$0xf]
    %v106 = vld [vmem:[#allocation2 + $0xcc] sm:$0xf]
    %v107 = vld [vmem:[#allocation2 + $0xd0] sm:$0xf]
    %v108 = vld [vmem:[#allocation2 + $0xd4] sm:$0xf]
    %v109 = vld [vmem:[#allocation2 + $0xd8] sm:$0xf]
    %v110 = vld [vmem:[#allocation2 + $0xdc] sm:$0xf]
    %v111 = vld [vmem:[#allocation2 + $0xe0] sm:$0xf]
    %v112 = vld [vmem:[#allocation2 + $0xe4] sm:$0xf]
    %v113 = vld [vmem:[#allocation2 + $0xe8] sm:$0xf]
    %v114 = vld [vmem:[#allocation2 + $0xec] sm:$0xf]
    %v115 = vld [vmem:[#allocation2 + $0xf0] sm:$0xf]
    %v116 = vld [vmem:[#allocation2 + $0xf4] sm:$0xf]
    %v117 = vld [vmem:[#allocation2 + $0xf8] sm:$0xf]
    %v118 = vld [vmem:[#allocation2 + $0xfc] sm:$0xf]
    %v119 = vld [vmem:[#allocation5] sm:$0xff]
    %v120 = vld [vmem:[#allocation5 + $0x8] sm:$0xff]
    %v121 = vld [vmem:[#allocation5 + $0x10] sm:$0xff]
    %v122 = vld [vmem:[#allocation5 + $0x18] sm:$0xff]
    %v123 = vld [vmem:[#allocation5 + $0x20] sm:$0xff]
    %v124 = vld [vmem:[#allocation5 + $0x28] sm:$0xff]
    %v125 = vld [vmem:[#allocation5 + $0x30] sm:$0xff]
    %v126 = vld [vmem:[#allocation5 + $0x38] sm:$0xff]
    %v127 = vld [vmem:[#allocation5 + $0x40] sm:$0xff]
    %v128 = vld [vmem:[#allocation5 + $0x48] sm:$0xff]
    %v129 = vld [vmem:[#allocation5 + $0x50] sm:$0xff]
    %v130 = vld [vmem:[#allocation5 + $0x58] sm:$0xff]
    %v131 = vld [vmem:[#allocation5 + $0x60] sm:$0xff]
    %v132 = vld [vmem:[#allocation5 + $0x68] sm:$0xff]
    %v133 = vld [vmem:[#allocation5 + $0x70] sm:$0xff]
    %v134 = vld [vmem:[#allocation5 + $0x78] sm:$0xff]
    %v135 = vld [vmem:[#allocation5 + $0x80] sm:$0xff]
    %v136 = vld [vmem:[#allocation5 + $0x88] sm:$0xff]
    %v137 = vld [vmem:[#allocation5 + $0x90] sm:$0xff]
    %v138 = vld [vmem:[#allocation5 + $0x98] sm:$0xff]
    %v139 = vld [vmem:[#allocation5 + $0xa0] sm:$0xff]
    %v140 = vld [vmem:[#allocation5 + $0xa8] sm:$0xff]
    %v141 = vld [vmem:[#allocation5 + $0xb0] sm:$0xff]
    %v142 = vld [vmem:[#allocation5 + $0xb8] sm:$0xff]
    %v143 = vld [vmem:[#allocation5 + $0xc0] sm:$0xff]
    %v144 = vld [vmem:[#allocation5 + $0xc8] sm:$0xff]
    %v145 = vld [vmem:[#allocation5 + $0xd0] sm:$0xff]
    %v146 = vld [vmem:[#allocation5 + $0xd8] sm:$0xff]
    %v147 = vld [vmem:[#allocation5 + $0xe0] sm:$0xff]
    %v148 = vld [vmem:[#allocation5 + $0xe8] sm:$0xff]
    %v149 = vld [vmem:[#allocation5 + $0xf0] sm:$0xff]
    %v150 = vld [vmem:[#allocation5 + $0xf8] sm:$0xff]
    %v151 = vld [vmem:[#allocation7] sm:$0xf]
    %v153 = vlaneseq
    %v154 = vshrl.u32 %v153, 7
    %v155 = vsub.s32 0, %v154
    %v156 = vrot.slane %v151, %v155
    %v157 = vlaneseq
    %v158 = vshrl.u32 %v157, 7
    %v159 = vsub.s32 1, %v158
    %v160 = vrot.slane %v151, %v159
    %v161 = vlaneseq
    %v162 = vshrl.u32 %v161, 7
    %v163 = vsub.s32 2, %v162
    %v164 = vrot.slane %v151, %v163
    %v165 = vlaneseq
    %v166 = vshrl.u32 %v165, 7
    %v167 = vsub.s32 3, %v166
    %v168 = vrot.slane %v151, %v167
    %v237 = vunpack.c.l.b16 %v55
    %v238 = vunpack.c.l.b16 %v56
    %v239 = vunpack.c.l.b16 %v57
    %v240 = vunpack.c.l.b16 %v58
    %v241 = vunpack.c.l.b16 %v59
    %v242 = vunpack.c.l.b16 %v60
    %v243 = vunpack.c.l.b16 %v61
    %v244 = vunpack.c.l.b16 %v62
    %v245 = vunpack.c.l.b16 %v63
    %v246 = vunpack.c.l.b16 %v64
    %v247 = vunpack.c.l.b16 %v65
    %v248 = vunpack.c.l.b16 %v66
    %v249 = vunpack.c.l.b16 %v67
    %v250 = vunpack.c.l.b16 %v68
    %v251 = vunpack.c.l.b16 %v69
    %v252 = vunpack.c.l.b16 %v70
    %v253 = vunpack.c.l.b16 %v71
    %v254 = vunpack.c.l.b16 %v72
    %v255 = vunpack.c.l.b16 %v73
    %v256 = vunpack.c.l.b16 %v74
    %v257 = vunpack.c.l.b16 %v75
    %v258 = vunpack.c.l.b16 %v76
    %v259 = vunpack.c.l.b16 %v77
    %v260 = vunpack.c.l.b16 %v78
    %v261 = vunpack.c.l.b16 %v79
    %v262 = vunpack.c.l.b16 %v80
    %v263 = vunpack.c.l.b16 %v81
    %v264 = vunpack.c.l.b16 %v82
    %v265 = vunpack.c.l.b16 %v83
    %v266 = vunpack.c.l.b16 %v84
    %v267 = vunpack.c.l.b16 %v85
    %v268 = vunpack.c.l.b16 %v86
    %v269 = vunpack.c.l.b16 %v87
    %v270 = vunpack.c.l.b16 %v88
    %v271 = vunpack.c.l.b16 %v89
    %v272 = vunpack.c.l.b16 %v90
    %v273 = vunpack.c.l.b16 %v91
    %v274 = vunpack.c.l.b16 %v92
    %v275 = vunpack.c.l.b16 %v93
    %v276 = vunpack.c.l.b16 %v94
    %v277 = vunpack.c.l.b16 %v95
    %v278 = vunpack.c.l.b16 %v96
    %v279 = vunpack.c.l.b16 %v97
    %v280 = vunpack.c.l.b16 %v98
    %v281 = vunpack.c.l.b16 %v99
    %v282 = vunpack.c.l.b16 %v100
    %v283 = vunpack.c.l.b16 %v101
    %v284 = vunpack.c.l.b16 %v102
    %v285 = vunpack.c.l.b16 %v103
    %v286 = vunpack.c.l.b16 %v104
    %v287 = vunpack.c.l.b16 %v105
    %v288 = vunpack.c.l.b16 %v106
    %v289 = vunpack.c.l.b16 %v107
    %v290 = vunpack.c.l.b16 %v108
    %v291 = vunpack.c.l.b16 %v109
    %v292 = vunpack.c.l.b16 %v110
    %v293 = vunpack.c.l.b16 %v111
    %v294 = vunpack.c.l.b16 %v112
    %v295 = vunpack.c.l.b16 %v113
    %v296 = vunpack.c.l.b16 %v114
    %v297 = vunpack.c.l.b16 %v115
    %v298 = vunpack.c.l.b16 %v116
    %v299 = vunpack.c.l.b16 %v117
    %v300 = vunpack.c.l.b16 %v118
    %v301 = vpack.c.b16 %v238, %v237
    %v302 = vpack.c.b16 %v240, %v239
    %v303 = vpack.c.b16 %v242, %v241
    %v304 = vpack.c.b16 %v244, %v243
    %v305 = vpack.c.b16 %v246, %v245
    %v306 = vpack.c.b16 %v248, %v247
    %v307 = vpack.c.b16 %v250, %v249
    %v308 = vpack.c.b16 %v252, %v251
    %v309 = vpack.c.b16 %v254, %v253
    %v310 = vpack.c.b16 %v256, %v255
    %v311 = vpack.c.b16 %v258, %v257
    %v312 = vpack.c.b16 %v260, %v259
    %v313 = vpack.c.b16 %v262, %v261
    %v314 = vpack.c.b16 %v264, %v263
    %v315 = vpack.c.b16 %v266, %v265
    %v316 = vpack.c.b16 %v268, %v267
    %v317 = vpack.c.b16 %v270, %v269
    %v318 = vpack.c.b16 %v272, %v271
    %v319 = vpack.c.b16 %v274, %v273
    %v320 = vpack.c.b16 %v276, %v275
    %v321 = vpack.c.b16 %v278, %v277
    %v322 = vpack.c.b16 %v280, %v279
    %v323 = vpack.c.b16 %v282, %v281
    %v324 = vpack.c.b16 %v284, %v283
    %v325 = vpack.c.b16 %v286, %v285
    %v326 = vpack.c.b16 %v288, %v287
    %v327 = vpack.c.b16 %v290, %v289
    %v328 = vpack.c.b16 %v292, %v291
    %v329 = vpack.c.b16 %v294, %v293
    %v330 = vpack.c.b16 %v296, %v295
    %v331 = vpack.c.b16 %v298, %v297
    %v332 = vpack.c.b16 %v300, %v299
    %v397 = vunpack.c.l.b16 %v119
    %v398 = vunpack.c.h.b16 %v119
    %v399 = vunpack.c.l.b16 %v120
    %v400 = vunpack.c.h.b16 %v120
    %v401 = vunpack.c.l.b16 %v121
    %v402 = vunpack.c.h.b16 %v121
    %v403 = vunpack.c.l.b16 %v122
    %v404 = vunpack.c.h.b16 %v122
    %v405 = vunpack.c.l.b16 %v123
    %v406 = vunpack.c.h.b16 %v123
    %v407 = vunpack.c.l.b16 %v124
    %v408 = vunpack.c.h.b16 %v124
    %v409 = vunpack.c.l.b16 %v125
    %v410 = vunpack.c.h.b16 %v125
    %v411 = vunpack.c.l.b16 %v126
    %v412 = vunpack.c.h.b16 %v126
    %v413 = vunpack.c.l.b16 %v127
    %v414 = vunpack.c.h.b16 %v127
    %v415 = vunpack.c.l.b16 %v128
    %v416 = vunpack.c.h.b16 %v128
    %v417 = vunpack.c.l.b16 %v129
    %v418 = vunpack.c.h.b16 %v129
    %v419 = vunpack.c.l.b16 %v130
    %v420 = vunpack.c.h.b16 %v130
    %v421 = vunpack.c.l.b16 %v131
    %v422 = vunpack.c.h.b16 %v131
    %v423 = vunpack.c.l.b16 %v132
    %v424 = vunpack.c.h.b16 %v132
    %v425 = vunpack.c.l.b16 %v133
    %v426 = vunpack.c.h.b16 %v133
    %v427 = vunpack.c.l.b16 %v134
    %v428 = vunpack.c.h.b16 %v134
    %v429 = vunpack.c.l.b16 %v135
    %v430 = vunpack.c.h.b16 %v135
    %v431 = vunpack.c.l.b16 %v136
    %v432 = vunpack.c.h.b16 %v136
    %v433 = vunpack.c.l.b16 %v137
    %v434 = vunpack.c.h.b16 %v137
    %v435 = vunpack.c.l.b16 %v138
    %v436 = vunpack.c.h.b16 %v138
    %v437 = vunpack.c.l.b16 %v139
    %v438 = vunpack.c.h.b16 %v139
    %v439 = vunpack.c.l.b16 %v140
    %v440 = vunpack.c.h.b16 %v140
    %v441 = vunpack.c.l.b16 %v141
    %v442 = vunpack.c.h.b16 %v141
    %v443 = vunpack.c.l.b16 %v142
    %v444 = vunpack.c.h.b16 %v142
    %v445 = vunpack.c.l.b16 %v143
    %v446 = vunpack.c.h.b16 %v143
    %v447 = vunpack.c.l.b16 %v144
    %v448 = vunpack.c.h.b16 %v144
    %v449 = vunpack.c.l.b16 %v145
    %v450 = vunpack.c.h.b16 %v145
    %v451 = vunpack.c.l.b16 %v146
    %v452 = vunpack.c.h.b16 %v146
    %v453 = vunpack.c.l.b16 %v147
    %v454 = vunpack.c.h.b16 %v147
    %v455 = vunpack.c.l.b16 %v148
    %v456 = vunpack.c.h.b16 %v148
    %v457 = vunpack.c.l.b16 %v149
    %v458 = vunpack.c.h.b16 %v149
    %v459 = vunpack.c.l.b16 %v150
    %v460 = vunpack.c.h.b16 %v150
    %v461 = vpack.c.b16 %v401, %v397
    %v462 = vpack.c.b16 %v402, %v398
    %v463 = vpack.c.b16 %v403, %v399
    %v464 = vpack.c.b16 %v404, %v400
    %v465 = vpack.c.b16 %v409, %v405
    %v466 = vpack.c.b16 %v410, %v406
    %v467 = vpack.c.b16 %v411, %v407
    %v468 = vpack.c.b16 %v412, %v408
    %v469 = vpack.c.b16 %v417, %v413
    %v470 = vpack.c.b16 %v418, %v414
    %v471 = vpack.c.b16 %v419, %v415
    %v472 = vpack.c.b16 %v420, %v416
    %v473 = vpack.c.b16 %v425, %v421
    %v474 = vpack.c.b16 %v426, %v422
    %v475 = vpack.c.b16 %v427, %v423
    %v476 = vpack.c.b16 %v428, %v424
    %v477 = vpack.c.b16 %v433, %v429
    %v478 = vpack.c.b16 %v434, %v430
    %v479 = vpack.c.b16 %v435, %v431
    %v480 = vpack.c.b16 %v436, %v432
    %v481 = vpack.c.b16 %v441, %v437
    %v482 = vpack.c.b16 %v442, %v438
    %v483 = vpack.c.b16 %v443, %v439
    %v484 = vpack.c.b16 %v444, %v440
    %v485 = vpack.c.b16 %v449, %v445
    %v486 = vpack.c.b16 %v450, %v446
    %v487 = vpack.c.b16 %v451, %v447
    %v488 = vpack.c.b16 %v452, %v448
    %v489 = vpack.c.b16 %v457, %v453
    %v490 = vpack.c.b16 %v458, %v454
    %v491 = vpack.c.b16 %v459, %v455
    %v492 = vpack.c.b16 %v460, %v456
    %525 = vmatprep.subr.bf16.mxu0 %v490
    %526 = vmatpush1.bf16.msra.mxu0 %v489
    %527 = vmatprep.subr.bf16.mxu0 %v486
    %528 = vmatpush1.bf16.msra.mxu0 %v485
    %529 = vmatprep.subr.bf16.mxu0 %v482
    %530 = vmatpush1.bf16.msra.mxu0 %v481
    %531 = vmatprep.subr.bf16.mxu0 %v478
    %532 = vmatpush1.bf16.msra.mxu0 %v477
    %533 = vmatprep.subr.bf16.mxu0 %v474
    %534 = vmatpush1.bf16.msra.mxu0 %v473
    %535 = vmatprep.subr.bf16.mxu0 %v470
    %536 = vmatpush1.bf16.msra.mxu0 %v469
    %537 = vmatprep.subr.bf16.mxu0 %v466
    %538 = vmatpush1.bf16.msra.mxu0 %v465
    %539 = vmatprep.subr.bf16.mxu0 %v462
    %540 = vmatpush1.bf16.msra.mxu0 %v461
    %541 = vmatprep.subr.bf16.mxu0 0
    %542 = vmatpush2.bf16.msra.mxu0 0
    %543 = vmatprep.subr.bf16.mxu0 0
    %544 = vmatpush2.bf16.msra.mxu0 0
    %545 = vmatprep.subr.bf16.mxu0 0
    %546 = vmatpush2.bf16.msra.mxu0 0
    %547 = vmatprep.subr.bf16.mxu0 0
    %548 = vmatpush2.bf16.msra.mxu0 0
    %549 = vmatprep.subr.bf16.mxu0 0
    %550 = vmatpush2.bf16.msra.mxu0 0
    %551 = vmatprep.subr.bf16.mxu0 0
    %552 = vmatpush2.bf16.msra.mxu0 0
    %553 = vmatprep.subr.bf16.mxu0 0
    %554 = vmatpush2.bf16.msra.mxu0 0
    %555 = vmatprep.subr.bf16.mxu0 0
    %556 = vmatpush2.bf16.msra.mxu0 0
    %557 = vmatprep.mubr.bf16.mxu0 0
    %558 = vmatmul.mubr.bf16.gmra.mxu0 %v301
    %v559 = vpop.f32.mrf.mxu0
    %v560 = vadd.f32 %v156, %v559
    %v561 = vpop.f32.mrf.mxu0
    %v562 = vadd.f32 %v160, %v561
    %v563 = vpop.f32.mrf.mxu0
    %v564 = vadd.f32 %v156, %v563
    %v565 = vpop.f32.mrf.mxu0
    %v566 = vadd.f32 %v160, %v565
    %567 = vmatprep.mubr.bf16.mxu0 0
    %568 = vmatmul.mubr.bf16.gmra.mxu0 %v302
    %v569 = vpop.f32.mrf.mxu0
    %v570 = vadd.f32 %v156, %v569
    %v571 = vpop.f32.mrf.mxu0
    %v572 = vadd.f32 %v160, %v571
    %v573 = vpop.f32.mrf.mxu0
    %v574 = vadd.f32 %v156, %v573
    %v575 = vpop.f32.mrf.mxu0
    %v576 = vadd.f32 %v160, %v575
    %577 = vmatprep.mubr.bf16.mxu0 0
    %578 = vmatmul.mubr.bf16.gmra.mxu0 %v303
    %v579 = vpop.f32.mrf.mxu0
    %v580 = vadd.f32 %v156, %v579
    %v581 = vpop.f32.mrf.mxu0
    %v582 = vadd.f32 %v160, %v581
    %v583 = vpop.f32.mrf.mxu0
    %v584 = vadd.f32 %v156, %v583
    %v585 = vpop.f32.mrf.mxu0
    %v586 = vadd.f32 %v160, %v585
    %587 = vmatprep.mubr.bf16.mxu0 0
    %588 = vmatmul.mubr.bf16.gmra.mxu0 %v304
    %v589 = vpop.f32.mrf.mxu0
    %v590 = vadd.f32 %v156, %v589
    %v591 = vpop.f32.mrf.mxu0
    %v592 = vadd.f32 %v160, %v591
    %v593 = vpop.f32.mrf.mxu0
    %v594 = vadd.f32 %v156, %v593
    %v595 = vpop.f32.mrf.mxu0
    %v596 = vadd.f32 %v160, %v595
    %597 = vmatprep.mubr.bf16.mxu0 0
    %598 = vmatmul.mubr.bf16.gmra.mxu0 %v305
    %v599 = vpop.f32.mrf.mxu0
    %v600 = vadd.f32 %v156, %v599
    %v601 = vpop.f32.mrf.mxu0
    %v602 = vadd.f32 %v160, %v601
    %v603 = vpop.f32.mrf.mxu0
    %v604 = vadd.f32 %v156, %v603
    %v605 = vpop.f32.mrf.mxu0
    %v606 = vadd.f32 %v160, %v605
    %607 = vmatprep.mubr.bf16.mxu0 0
    %608 = vmatmul.mubr.bf16.gmra.mxu0 %v306
    %v609 = vpop.f32.mrf.mxu0
    %v610 = vadd.f32 %v156, %v609
    %v611 = vpop.f32.mrf.mxu0
    %v612 = vadd.f32 %v160, %v611
    %v613 = vpop.f32.mrf.mxu0
    %v614 = vadd.f32 %v156, %v613
    %v615 = vpop.f32.mrf.mxu0
    %v616 = vadd.f32 %v160, %v615
    %617 = vmatprep.mubr.bf16.mxu0 0
    %618 = vmatmul.mubr.bf16.gmra.mxu0 %v307
    %v619 = vpop.f32.mrf.mxu0
    %v620 = vadd.f32 %v156, %v619
    %v621 = vpop.f32.mrf.mxu0
    %v622 = vadd.f32 %v160, %v621
    %v623 = vpop.f32.mrf.mxu0
    %v624 = vadd.f32 %v156, %v623
    %v625 = vpop.f32.mrf.mxu0
    %v626 = vadd.f32 %v160, %v625
    %627 = vmatprep.mubr.bf16.mxu0 0
    %628 = vmatmul.mubr.bf16.gmra.mxu0 %v308
    %v629 = vpop.f32.mrf.mxu0
    %v630 = vadd.f32 %v156, %v629
    %v631 = vpop.f32.mrf.mxu0
    %v632 = vadd.f32 %v160, %v631
    %v633 = vpop.f32.mrf.mxu0
    %v634 = vadd.f32 %v156, %v633
    %v635 = vpop.f32.mrf.mxu0
    %v636 = vadd.f32 %v160, %v635
    %637 = vmatprep.mubr.bf16.mxu0 0
    %638 = vmatmul.mubr.bf16.gmra.mxu0 %v309
    %v639 = vpop.f32.mrf.mxu0
    %v640 = vadd.f32 %v156, %v639
    %v641 = vpop.f32.mrf.mxu0
    %v642 = vadd.f32 %v160, %v641
    %v643 = vpop.f32.mrf.mxu0
    %v644 = vadd.f32 %v156, %v643
    %v645 = vpop.f32.mrf.mxu0
    %v646 = vadd.f32 %v160, %v645
    %647 = vmatprep.mubr.bf16.mxu0 0
    %648 = vmatmul.mubr.bf16.gmra.mxu0 %v310
    %v649 = vpop.f32.mrf.mxu0
    %v650 = vadd.f32 %v156, %v649
    %v651 = vpop.f32.mrf.mxu0
    %v652 = vadd.f32 %v160, %v651
    %v653 = vpop.f32.mrf.mxu0
    %v654 = vadd.f32 %v156, %v653
    %v655 = vpop.f32.mrf.mxu0
    %v656 = vadd.f32 %v160, %v655
    %657 = vmatprep.mubr.bf16.mxu0 0
    %658 = vmatmul.mubr.bf16.gmra.mxu0 %v311
    %v659 = vpop.f32.mrf.mxu0
    %v660 = vadd.f32 %v156, %v659
    %v661 = vpop.f32.mrf.mxu0
    %v662 = vadd.f32 %v160, %v661
    %v663 = vpop.f32.mrf.mxu0
    %v664 = vadd.f32 %v156, %v663
    %v665 = vpop.f32.mrf.mxu0
    %v666 = vadd.f32 %v160, %v665
    %667 = vmatprep.mubr.bf16.mxu0 0
    %668 = vmatmul.mubr.bf16.gmra.mxu0 %v312
    %v669 = vpop.f32.mrf.mxu0
    %v670 = vadd.f32 %v156, %v669
    %v671 = vpop.f32.mrf.mxu0
    %v672 = vadd.f32 %v160, %v671
    %v673 = vpop.f32.mrf.mxu0
    %v674 = vadd.f32 %v156, %v673
    %v675 = vpop.f32.mrf.mxu0
    %v676 = vadd.f32 %v160, %v675
    %677 = vmatprep.mubr.bf16.mxu0 0
    %678 = vmatmul.mubr.bf16.gmra.mxu0 %v313
    %v679 = vpop.f32.mrf.mxu0
    %v680 = vadd.f32 %v156, %v679
    %v681 = vpop.f32.mrf.mxu0
    %v682 = vadd.f32 %v160, %v681
    %v683 = vpop.f32.mrf.mxu0
    %v684 = vadd.f32 %v156, %v683
    %v685 = vpop.f32.mrf.mxu0
    %v686 = vadd.f32 %v160, %v685
    %687 = vmatprep.mubr.bf16.mxu0 0
    %688 = vmatmul.mubr.bf16.gmra.mxu0 %v314
    %v689 = vpop.f32.mrf.mxu0
    %v690 = vadd.f32 %v156, %v689
    %v691 = vpop.f32.mrf.mxu0
    %v692 = vadd.f32 %v160, %v691
    %v693 = vpop.f32.mrf.mxu0
    %v694 = vadd.f32 %v156, %v693
    %v695 = vpop.f32.mrf.mxu0
    %v696 = vadd.f32 %v160, %v695
    %697 = vmatprep.mubr.bf16.mxu0 0
    %698 = vmatmul.mubr.bf16.gmra.mxu0 %v315
    %v699 = vpop.f32.mrf.mxu0
    %v700 = vadd.f32 %v156, %v699
    %v701 = vpop.f32.mrf.mxu0
    %v702 = vadd.f32 %v160, %v701
    %v703 = vpop.f32.mrf.mxu0
    %v704 = vadd.f32 %v156, %v703
    %v705 = vpop.f32.mrf.mxu0
    %v706 = vadd.f32 %v160, %v705
    %707 = vmatprep.mubr.bf16.mxu0 0
    %708 = vmatmul.mubr.bf16.gmra.mxu0 %v316
    %v709 = vpop.f32.mrf.mxu0
    %v710 = vadd.f32 %v156, %v709
    %v711 = vpop.f32.mrf.mxu0
    %v712 = vadd.f32 %v160, %v711
    %v713 = vpop.f32.mrf.mxu0
    %v714 = vadd.f32 %v156, %v713
    %v715 = vpop.f32.mrf.mxu0
    %v716 = vadd.f32 %v160, %v715
    %717 = vmatprep.mubr.bf16.mxu0 0
    %718 = vmatmul.mubr.bf16.gmra.mxu0 %v317
    %v719 = vpop.f32.mrf.mxu0
    %v720 = vadd.f32 %v156, %v719
    %v721 = vpop.f32.mrf.mxu0
    %v722 = vadd.f32 %v160, %v721
    %v723 = vpop.f32.mrf.mxu0
    %v724 = vadd.f32 %v156, %v723
    %v725 = vpop.f32.mrf.mxu0
    %v726 = vadd.f32 %v160, %v725
    %727 = vmatprep.mubr.bf16.mxu0 0
    %728 = vmatmul.mubr.bf16.gmra.mxu0 %v318
    %v729 = vpop.f32.mrf.mxu0
    %v730 = vadd.f32 %v156, %v729
    %v731 = vpop.f32.mrf.mxu0
    %v732 = vadd.f32 %v160, %v731
    %v733 = vpop.f32.mrf.mxu0
    %v734 = vadd.f32 %v156, %v733
    %v735 = vpop.f32.mrf.mxu0
    %v736 = vadd.f32 %v160, %v735
    %737 = vmatprep.mubr.bf16.mxu0 0
    %738 = vmatmul.mubr.bf16.gmra.mxu0 %v319
    %v739 = vpop.f32.mrf.mxu0
    %v740 = vadd.f32 %v156, %v739
    %v741 = vpop.f32.mrf.mxu0
    %v742 = vadd.f32 %v160, %v741
    %v743 = vpop.f32.mrf.mxu0
    %v744 = vadd.f32 %v156, %v743
    %v745 = vpop.f32.mrf.mxu0
    %v746 = vadd.f32 %v160, %v745
    %747 = vmatprep.mubr.bf16.mxu0 0
    %748 = vmatmul.mubr.bf16.gmra.mxu0 %v320
    %v749 = vpop.f32.mrf.mxu0
    %v750 = vadd.f32 %v156, %v749
    %v751 = vpop.f32.mrf.mxu0
    %v752 = vadd.f32 %v160, %v751
    %v753 = vpop.f32.mrf.mxu0
    %v754 = vadd.f32 %v156, %v753
    %v755 = vpop.f32.mrf.mxu0
    %v756 = vadd.f32 %v160, %v755
    %757 = vmatprep.mubr.bf16.mxu0 0
    %758 = vmatmul.mubr.bf16.gmra.mxu0 %v321
    %v759 = vpop.f32.mrf.mxu0
    %v760 = vadd.f32 %v156, %v759
    %v761 = vpop.f32.mrf.mxu0
    %v762 = vadd.f32 %v160, %v761
    %v763 = vpop.f32.mrf.mxu0
    %v764 = vadd.f32 %v156, %v763
    %v765 = vpop.f32.mrf.mxu0
    %v766 = vadd.f32 %v160, %v765
    %767 = vmatprep.mubr.bf16.mxu0 0
    %768 = vmatmul.mubr.bf16.gmra.mxu0 %v322
    %v769 = vpop.f32.mrf.mxu0
    %v770 = vadd.f32 %v156, %v769
    %v771 = vpop.f32.mrf.mxu0
    %v772 = vadd.f32 %v160, %v771
    %v773 = vpop.f32.mrf.mxu0
    %v774 = vadd.f32 %v156, %v773
    %v775 = vpop.f32.mrf.mxu0
    %v776 = vadd.f32 %v160, %v775
    %777 = vmatprep.mubr.bf16.mxu0 0
    %778 = vmatmul.mubr.bf16.gmra.mxu0 %v323
    %v779 = vpop.f32.mrf.mxu0
    %v780 = vadd.f32 %v156, %v779
    %v781 = vpop.f32.mrf.mxu0
    %v782 = vadd.f32 %v160, %v781
    %v783 = vpop.f32.mrf.mxu0
    %v784 = vadd.f32 %v156, %v783
    %v785 = vpop.f32.mrf.mxu0
    %v786 = vadd.f32 %v160, %v785
    %787 = vmatprep.mubr.bf16.mxu0 0
    %788 = vmatmul.mubr.bf16.gmra.mxu0 %v324
    %v789 = vpop.f32.mrf.mxu0
    %v790 = vadd.f32 %v156, %v789
    %v791 = vpop.f32.mrf.mxu0
    %v792 = vadd.f32 %v160, %v791
    %v793 = vpop.f32.mrf.mxu0
    %v794 = vadd.f32 %v156, %v793
    %v795 = vpop.f32.mrf.mxu0
    %v796 = vadd.f32 %v160, %v795
    %797 = vmatprep.mubr.bf16.mxu0 0
    %798 = vmatmul.mubr.bf16.gmra.mxu0 %v325
    %v799 = vpop.f32.mrf.mxu0
    %v800 = vadd.f32 %v156, %v799
    %v801 = vpop.f32.mrf.mxu0
    %v802 = vadd.f32 %v160, %v801
    %v803 = vpop.f32.mrf.mxu0
    %v804 = vadd.f32 %v156, %v803
    %v805 = vpop.f32.mrf.mxu0
    %v806 = vadd.f32 %v160, %v805
    %807 = vmatprep.mubr.bf16.mxu0 0
    %808 = vmatmul.mubr.bf16.gmra.mxu0 %v326
    %v809 = vpop.f32.mrf.mxu0
    %v810 = vadd.f32 %v156, %v809
    %v811 = vpop.f32.mrf.mxu0
    %v812 = vadd.f32 %v160, %v811
    %v813 = vpop.f32.mrf.mxu0
    %v814 = vadd.f32 %v156, %v813
    %v815 = vpop.f32.mrf.mxu0
    %v816 = vadd.f32 %v160, %v815
    %817 = vmatprep.mubr.bf16.mxu0 0
    %818 = vmatmul.mubr.bf16.gmra.mxu0 %v327
    %v819 = vpop.f32.mrf.mxu0
    %v820 = vadd.f32 %v156, %v819
    %v821 = vpop.f32.mrf.mxu0
    %v822 = vadd.f32 %v160, %v821
    %v823 = vpop.f32.mrf.mxu0
    %v824 = vadd.f32 %v156, %v823
    %v825 = vpop.f32.mrf.mxu0
    %v826 = vadd.f32 %v160, %v825
    %827 = vmatprep.mubr.bf16.mxu0 0
    %828 = vmatmul.mubr.bf16.gmra.mxu0 %v328
    %v829 = vpop.f32.mrf.mxu0
    %v830 = vadd.f32 %v156, %v829
    %v831 = vpop.f32.mrf.mxu0
    %v832 = vadd.f32 %v160, %v831
    %v833 = vpop.f32.mrf.mxu0
    %v834 = vadd.f32 %v156, %v833
    %v835 = vpop.f32.mrf.mxu0
    %v836 = vadd.f32 %v160, %v835
    %837 = vmatprep.mubr.bf16.mxu0 0
    %838 = vmatmul.mubr.bf16.gmra.mxu0 %v329
    %v839 = vpop.f32.mrf.mxu0
    %v840 = vadd.f32 %v156, %v839
    %v841 = vpop.f32.mrf.mxu0
    %v842 = vadd.f32 %v160, %v841
    %v843 = vpop.f32.mrf.mxu0
    %v844 = vadd.f32 %v156, %v843
    %v845 = vpop.f32.mrf.mxu0
    %v846 = vadd.f32 %v160, %v845
    %847 = vmatprep.mubr.bf16.mxu0 0
    %848 = vmatmul.mubr.bf16.gmra.mxu0 %v330
    %v849 = vpop.f32.mrf.mxu0
    %v850 = vadd.f32 %v156, %v849
    %v851 = vpop.f32.mrf.mxu0
    %v852 = vadd.f32 %v160, %v851
    %v853 = vpop.f32.mrf.mxu0
    %v854 = vadd.f32 %v156, %v853
    %v855 = vpop.f32.mrf.mxu0
    %v856 = vadd.f32 %v160, %v855
    %857 = vmatprep.mubr.bf16.mxu0 0
    %858 = vmatmul.mubr.bf16.gmra.mxu0 %v331
    %v859 = vpop.f32.mrf.mxu0
    %v860 = vadd.f32 %v156, %v859
    %v861 = vpop.f32.mrf.mxu0
    %v862 = vadd.f32 %v160, %v861
    %v863 = vpop.f32.mrf.mxu0
    %v864 = vadd.f32 %v156, %v863
    %v865 = vpop.f32.mrf.mxu0
    %v866 = vadd.f32 %v160, %v865
    %867 = vmatprep.mubr.bf16.mxu0 0
    %868 = vmatmul.mubr.bf16.gmra.mxu0 %v332
    %v869 = vpop.f32.mrf.mxu0
    %v870 = vadd.f32 %v156, %v869
    %v871 = vpop.f32.mrf.mxu0
    %v872 = vadd.f32 %v160, %v871
    %v873 = vpop.f32.mrf.mxu0
    %v874 = vadd.f32 %v156, %v873
    %v875 = vpop.f32.mrf.mxu0
    %v876 = vadd.f32 %v160, %v875
    %877 = vdwg.mxu0
    %878 = vmatprep.subr.bf16.mxu0 %v492
    %879 = vmatpush1.bf16.msra.mxu0 %v491
    %880 = vmatprep.subr.bf16.mxu0 %v488
    %881 = vmatpush1.bf16.msra.mxu0 %v487
    %882 = vmatprep.subr.bf16.mxu0 %v484
    %883 = vmatpush1.bf16.msra.mxu0 %v483
    %884 = vmatprep.subr.bf16.mxu0 %v480
    %885 = vmatpush1.bf16.msra.mxu0 %v479
    %886 = vmatprep.subr.bf16.mxu0 %v476
    %887 = vmatpush1.bf16.msra.mxu0 %v475
    %888 = vmatprep.subr.bf16.mxu0 %v472
    %889 = vmatpush1.bf16.msra.mxu0 %v471
    %890 = vmatprep.subr.bf16.mxu0 %v468
    %891 = vmatpush1.bf16.msra.mxu0 %v467
    %892 = vmatprep.subr.bf16.mxu0 %v464
    %893 = vmatpush1.bf16.msra.mxu0 %v463
    %894 = vmatprep.subr.bf16.mxu0 0
    %895 = vmatpush2.bf16.msra.mxu0 0
    %896 = vmatprep.subr.bf16.mxu0 0
    %897 = vmatpush2.bf16.msra.mxu0 0
    %898 = vmatprep.subr.bf16.mxu0 0
    %899 = vmatpush2.bf16.msra.mxu0 0
    %900 = vmatprep.subr.bf16.mxu0 0
    %901 = vmatpush2.bf16.msra.mxu0 0
    %902 = vmatprep.subr.bf16.mxu0 0
    %903 = vmatpush2.bf16.msra.mxu0 0
    %904 = vmatprep.subr.bf16.mxu0 0
    %905 = vmatpush2.bf16.msra.mxu0 0
    %906 = vmatprep.subr.bf16.mxu0 0
    %907 = vmatpush2.bf16.msra.mxu0 0
    %908 = vmatprep.subr.bf16.mxu0 0
    %909 = vmatpush2.bf16.msra.mxu0 0
    %910 = vmatprep.mubr.bf16.mxu0 0
    %911 = vmatmul.mubr.bf16.gmra.mxu0 %v301
    %v912 = vpop.f32.mrf.mxu0
    %v913 = vadd.f32 %v164, %v912
    %v914 = vpop.f32.mrf.mxu0
    %v915 = vadd.f32 %v168, %v914
    %v916 = vpop.f32.mrf.mxu0
    %v917 = vadd.f32 %v164, %v916
    %v918 = vpop.f32.mrf.mxu0
    %v919 = vadd.f32 %v168, %v918
    %920 = vmatprep.mubr.bf16.mxu0 0
    %921 = vmatmul.mubr.bf16.gmra.mxu0 %v302
    %v922 = vpop.f32.mrf.mxu0
    %v923 = vadd.f32 %v164, %v922
    %v924 = vpop.f32.mrf.mxu0
    %v925 = vadd.f32 %v168, %v924
    %v926 = vpop.f32.mrf.mxu0
    %v927 = vadd.f32 %v164, %v926
    %v928 = vpop.f32.mrf.mxu0
    %v929 = vadd.f32 %v168, %v928
    %930 = vmatprep.mubr.bf16.mxu0 0
    %931 = vmatmul.mubr.bf16.gmra.mxu0 %v303
    %v932 = vpop.f32.mrf.mxu0
    %v933 = vadd.f32 %v164, %v932
    %v934 = vpop.f32.mrf.mxu0
    %v935 = vadd.f32 %v168, %v934
    %v936 = vpop.f32.mrf.mxu0
    %v937 = vadd.f32 %v164, %v936
    %v938 = vpop.f32.mrf.mxu0
    %v939 = vadd.f32 %v168, %v938
    %940 = vmatprep.mubr.bf16.mxu0 0
    %941 = vmatmul.mubr.bf16.gmra.mxu0 %v304
    %v942 = vpop.f32.mrf.mxu0
    %v943 = vadd.f32 %v164, %v942
    %v944 = vpop.f32.mrf.mxu0
    %v945 = vadd.f32 %v168, %v944
    %v946 = vpop.f32.mrf.mxu0
    %v947 = vadd.f32 %v164, %v946
    %v948 = vpop.f32.mrf.mxu0
    %v949 = vadd.f32 %v168, %v948
    %950 = vmatprep.mubr.bf16.mxu0 0
    %951 = vmatmul.mubr.bf16.gmra.mxu0 %v305
    %v952 = vpop.f32.mrf.mxu0
    %v953 = vadd.f32 %v164, %v952
    %v954 = vpop.f32.mrf.mxu0
    %v955 = vadd.f32 %v168, %v954
    %v956 = vpop.f32.mrf.mxu0
    %v957 = vadd.f32 %v164, %v956
    %v958 = vpop.f32.mrf.mxu0
    %v959 = vadd.f32 %v168, %v958
    %960 = vmatprep.mubr.bf16.mxu0 0
    %961 = vmatmul.mubr.bf16.gmra.mxu0 %v306
    %v962 = vpop.f32.mrf.mxu0
    %v963 = vadd.f32 %v164, %v962
    %v964 = vpop.f32.mrf.mxu0
    %v965 = vadd.f32 %v168, %v964
    %v966 = vpop.f32.mrf.mxu0
    %v967 = vadd.f32 %v164, %v966
    %v968 = vpop.f32.mrf.mxu0
    %v969 = vadd.f32 %v168, %v968
    %970 = vmatprep.mubr.bf16.mxu0 0
    %971 = vmatmul.mubr.bf16.gmra.mxu0 %v307
    %v972 = vpop.f32.mrf.mxu0
    %v973 = vadd.f32 %v164, %v972
    %v974 = vpop.f32.mrf.mxu0
    %v975 = vadd.f32 %v168, %v974
    %v976 = vpop.f32.mrf.mxu0
    %v977 = vadd.f32 %v164, %v976
    %v978 = vpop.f32.mrf.mxu0
    %v979 = vadd.f32 %v168, %v978
    %980 = vmatprep.mubr.bf16.mxu0 0
    %981 = vmatmul.mubr.bf16.gmra.mxu0 %v308
    %v982 = vpop.f32.mrf.mxu0
    %v983 = vadd.f32 %v164, %v982
    %v984 = vpop.f32.mrf.mxu0
    %v985 = vadd.f32 %v168, %v984
    %v986 = vpop.f32.mrf.mxu0
    %v987 = vadd.f32 %v164, %v986
    %v988 = vpop.f32.mrf.mxu0
    %v989 = vadd.f32 %v168, %v988
    %990 = vmatprep.mubr.bf16.mxu0 0
    %991 = vmatmul.mubr.bf16.gmra.mxu0 %v309
    %v992 = vpop.f32.mrf.mxu0
    %v993 = vadd.f32 %v164, %v992
    %v994 = vpop.f32.mrf.mxu0
    %v995 = vadd.f32 %v168, %v994
    %v996 = vpop.f32.mrf.mxu0
    %v997 = vadd.f32 %v164, %v996
    %v998 = vpop.f32.mrf.mxu0
    %v999 = vadd.f32 %v168, %v998
    %1000 = vmatprep.mubr.bf16.mxu0 0
    %1001 = vmatmul.mubr.bf16.gmra.mxu0 %v310
    %v1002 = vpop.f32.mrf.mxu0
    %v1003 = vadd.f32 %v164, %v1002
    %v1004 = vpop.f32.mrf.mxu0
    %v1005 = vadd.f32 %v168, %v1004
    %v1006 = vpop.f32.mrf.mxu0
    %v1007 = vadd.f32 %v164, %v1006
    %v1008 = vpop.f32.mrf.mxu0
    %v1009 = vadd.f32 %v168, %v1008
    %1010 = vmatprep.mubr.bf16.mxu0 0
    %1011 = vmatmul.mubr.bf16.gmra.mxu0 %v311
    %v1012 = vpop.f32.mrf.mxu0
    %v1013 = vadd.f32 %v164, %v1012
    %v1014 = vpop.f32.mrf.mxu0
    %v1015 = vadd.f32 %v168, %v1014
    %v1016 = vpop.f32.mrf.mxu0
    %v1017 = vadd.f32 %v164, %v1016
    %v1018 = vpop.f32.mrf.mxu0
    %v1019 = vadd.f32 %v168, %v1018
    %1020 = vmatprep.mubr.bf16.mxu0 0
    %1021 = vmatmul.mubr.bf16.gmra.mxu0 %v312
    %v1022 = vpop.f32.mrf.mxu0
    %v1023 = vadd.f32 %v164, %v1022
    %v1024 = vpop.f32.mrf.mxu0
    %v1025 = vadd.f32 %v168, %v1024
    %v1026 = vpop.f32.mrf.mxu0
    %v1027 = vadd.f32 %v164, %v1026
    %v1028 = vpop.f32.mrf.mxu0
    %v1029 = vadd.f32 %v168, %v1028
    %1030 = vmatprep.mubr.bf16.mxu0 0
    %1031 = vmatmul.mubr.bf16.gmra.mxu0 %v313
    %v1032 = vpop.f32.mrf.mxu0
    %v1033 = vadd.f32 %v164, %v1032
    %v1034 = vpop.f32.mrf.mxu0
    %v1035 = vadd.f32 %v168, %v1034
    %v1036 = vpop.f32.mrf.mxu0
    %v1037 = vadd.f32 %v164, %v1036
    %v1038 = vpop.f32.mrf.mxu0
    %v1039 = vadd.f32 %v168, %v1038
    %1040 = vmatprep.mubr.bf16.mxu0 0
    %1041 = vmatmul.mubr.bf16.gmra.mxu0 %v314
    %v1042 = vpop.f32.mrf.mxu0
    %v1043 = vadd.f32 %v164, %v1042
    %v1044 = vpop.f32.mrf.mxu0
    %v1045 = vadd.f32 %v168, %v1044
    %v1046 = vpop.f32.mrf.mxu0
    %v1047 = vadd.f32 %v164, %v1046
    %v1048 = vpop.f32.mrf.mxu0
    %v1049 = vadd.f32 %v168, %v1048
    %1050 = vmatprep.mubr.bf16.mxu0 0
    %1051 = vmatmul.mubr.bf16.gmra.mxu0 %v315
    %v1052 = vpop.f32.mrf.mxu0
    %v1053 = vadd.f32 %v164, %v1052
    %v1054 = vpop.f32.mrf.mxu0
    %v1055 = vadd.f32 %v168, %v1054
    %v1056 = vpop.f32.mrf.mxu0
    %v1057 = vadd.f32 %v164, %v1056
    %v1058 = vpop.f32.mrf.mxu0
    %v1059 = vadd.f32 %v168, %v1058
    %1060 = vmatprep.mubr.bf16.mxu0 0
    %1061 = vmatmul.mubr.bf16.gmra.mxu0 %v316
    %v1062 = vpop.f32.mrf.mxu0
    %v1063 = vadd.f32 %v164, %v1062
    %v1064 = vpop.f32.mrf.mxu0
    %v1065 = vadd.f32 %v168, %v1064
    %v1066 = vpop.f32.mrf.mxu0
    %v1067 = vadd.f32 %v164, %v1066
    %v1068 = vpop.f32.mrf.mxu0
    %v1069 = vadd.f32 %v168, %v1068
    %1070 = vmatprep.mubr.bf16.mxu0 0
    %1071 = vmatmul.mubr.bf16.gmra.mxu0 %v317
    %v1072 = vpop.f32.mrf.mxu0
    %v1073 = vadd.f32 %v164, %v1072
    %v1074 = vpop.f32.mrf.mxu0
    %v1075 = vadd.f32 %v168, %v1074
    %v1076 = vpop.f32.mrf.mxu0
    %v1077 = vadd.f32 %v164, %v1076
    %v1078 = vpop.f32.mrf.mxu0
    %v1079 = vadd.f32 %v168, %v1078
    %1080 = vmatprep.mubr.bf16.mxu0 0
    %1081 = vmatmul.mubr.bf16.gmra.mxu0 %v318
    %v1082 = vpop.f32.mrf.mxu0
    %v1083 = vadd.f32 %v164, %v1082
    %v1084 = vpop.f32.mrf.mxu0
    %v1085 = vadd.f32 %v168, %v1084
    %v1086 = vpop.f32.mrf.mxu0
    %v1087 = vadd.f32 %v164, %v1086
    %v1088 = vpop.f32.mrf.mxu0
    %v1089 = vadd.f32 %v168, %v1088
    %1090 = vmatprep.mubr.bf16.mxu0 0
    %1091 = vmatmul.mubr.bf16.gmra.mxu0 %v319
    %v1092 = vpop.f32.mrf.mxu0
    %v1093 = vadd.f32 %v164, %v1092
    %v1094 = vpop.f32.mrf.mxu0
    %v1095 = vadd.f32 %v168, %v1094
    %v1096 = vpop.f32.mrf.mxu0
    %v1097 = vadd.f32 %v164, %v1096
    %v1098 = vpop.f32.mrf.mxu0
    %v1099 = vadd.f32 %v168, %v1098
    %1100 = vmatprep.mubr.bf16.mxu0 0
    %1101 = vmatmul.mubr.bf16.gmra.mxu0 %v320
    %v1102 = vpop.f32.mrf.mxu0
    %v1103 = vadd.f32 %v164, %v1102
    %v1104 = vpop.f32.mrf.mxu0
    %v1105 = vadd.f32 %v168, %v1104
    %v1106 = vpop.f32.mrf.mxu0
    %v1107 = vadd.f32 %v164, %v1106
    %v1108 = vpop.f32.mrf.mxu0
    %v1109 = vadd.f32 %v168, %v1108
    %1110 = vmatprep.mubr.bf16.mxu0 0
    %1111 = vmatmul.mubr.bf16.gmra.mxu0 %v321
    %v1112 = vpop.f32.mrf.mxu0
    %v1113 = vadd.f32 %v164, %v1112
    %v1114 = vpop.f32.mrf.mxu0
    %v1115 = vadd.f32 %v168, %v1114
    %v1116 = vpop.f32.mrf.mxu0
    %v1117 = vadd.f32 %v164, %v1116
    %v1118 = vpop.f32.mrf.mxu0
    %v1119 = vadd.f32 %v168, %v1118
    %1120 = vmatprep.mubr.bf16.mxu0 0
    %1121 = vmatmul.mubr.bf16.gmra.mxu0 %v322
    %v1122 = vpop.f32.mrf.mxu0
    %v1123 = vadd.f32 %v164, %v1122
    %v1124 = vpop.f32.mrf.mxu0
    %v1125 = vadd.f32 %v168, %v1124
    %v1126 = vpop.f32.mrf.mxu0
    %v1127 = vadd.f32 %v164, %v1126
    %v1128 = vpop.f32.mrf.mxu0
    %v1129 = vadd.f32 %v168, %v1128
    %1130 = vmatprep.mubr.bf16.mxu0 0
    %1131 = vmatmul.mubr.bf16.gmra.mxu0 %v323
    %v1132 = vpop.f32.mrf.mxu0
    %v1133 = vadd.f32 %v164, %v1132
    %v1134 = vpop.f32.mrf.mxu0
    %v1135 = vadd.f32 %v168, %v1134
    %v1136 = vpop.f32.mrf.mxu0
    %v1137 = vadd.f32 %v164, %v1136
    %v1138 = vpop.f32.mrf.mxu0
    %v1139 = vadd.f32 %v168, %v1138
    %1140 = vmatprep.mubr.bf16.mxu0 0
    %1141 = vmatmul.mubr.bf16.gmra.mxu0 %v324
    %v1142 = vpop.f32.mrf.mxu0
    %v1143 = vadd.f32 %v164, %v1142
    %v1144 = vpop.f32.mrf.mxu0
    %v1145 = vadd.f32 %v168, %v1144
    %v1146 = vpop.f32.mrf.mxu0
    %v1147 = vadd.f32 %v164, %v1146
    %v1148 = vpop.f32.mrf.mxu0
    %v1149 = vadd.f32 %v168, %v1148
    %1150 = vmatprep.mubr.bf16.mxu0 0
    %1151 = vmatmul.mubr.bf16.gmra.mxu0 %v325
    %v1152 = vpop.f32.mrf.mxu0
    %v1153 = vadd.f32 %v164, %v1152
    %v1154 = vpop.f32.mrf.mxu0
    %v1155 = vadd.f32 %v168, %v1154
    %v1156 = vpop.f32.mrf.mxu0
    %v1157 = vadd.f32 %v164, %v1156
    %v1158 = vpop.f32.mrf.mxu0
    %v1159 = vadd.f32 %v168, %v1158
    %1160 = vmatprep.mubr.bf16.mxu0 0
    %1161 = vmatmul.mubr.bf16.gmra.mxu0 %v326
    %v1162 = vpop.f32.mrf.mxu0
    %v1163 = vadd.f32 %v164, %v1162
    %v1164 = vpop.f32.mrf.mxu0
    %v1165 = vadd.f32 %v168, %v1164
    %v1166 = vpop.f32.mrf.mxu0
    %v1167 = vadd.f32 %v164, %v1166
    %v1168 = vpop.f32.mrf.mxu0
    %v1169 = vadd.f32 %v168, %v1168
    %1170 = vmatprep.mubr.bf16.mxu0 0
    %1171 = vmatmul.mubr.bf16.gmra.mxu0 %v327
    %v1172 = vpop.f32.mrf.mxu0
    %v1173 = vadd.f32 %v164, %v1172
    %v1174 = vpop.f32.mrf.mxu0
    %v1175 = vadd.f32 %v168, %v1174
    %v1176 = vpop.f32.mrf.mxu0
    %v1177 = vadd.f32 %v164, %v1176
    %v1178 = vpop.f32.mrf.mxu0
    %v1179 = vadd.f32 %v168, %v1178
    %1180 = vmatprep.mubr.bf16.mxu0 0
    %1181 = vmatmul.mubr.bf16.gmra.mxu0 %v328
    %v1182 = vpop.f32.mrf.mxu0
    %v1183 = vadd.f32 %v164, %v1182
    %v1184 = vpop.f32.mrf.mxu0
    %v1185 = vadd.f32 %v168, %v1184
    %v1186 = vpop.f32.mrf.mxu0
    %v1187 = vadd.f32 %v164, %v1186
    %v1188 = vpop.f32.mrf.mxu0
    %v1189 = vadd.f32 %v168, %v1188
    %1190 = vmatprep.mubr.bf16.mxu0 0
    %1191 = vmatmul.mubr.bf16.gmra.mxu0 %v329
    %v1192 = vpop.f32.mrf.mxu0
    %v1193 = vadd.f32 %v164, %v1192
    %v1194 = vpop.f32.mrf.mxu0
    %v1195 = vadd.f32 %v168, %v1194
    %v1196 = vpop.f32.mrf.mxu0
    %v1197 = vadd.f32 %v164, %v1196
    %v1198 = vpop.f32.mrf.mxu0
    %v1199 = vadd.f32 %v168, %v1198
    %1200 = vmatprep.mubr.bf16.mxu0 0
    %1201 = vmatmul.mubr.bf16.gmra.mxu0 %v330
    %v1202 = vpop.f32.mrf.mxu0
    %v1203 = vadd.f32 %v164, %v1202
    %v1204 = vpop.f32.mrf.mxu0
    %v1205 = vadd.f32 %v168, %v1204
    %v1206 = vpop.f32.mrf.mxu0
    %v1207 = vadd.f32 %v164, %v1206
    %v1208 = vpop.f32.mrf.mxu0
    %v1209 = vadd.f32 %v168, %v1208
    %1210 = vmatprep.mubr.bf16.mxu0 0
    %1211 = vmatmul.mubr.bf16.gmra.mxu0 %v331
    %v1212 = vpop.f32.mrf.mxu0
    %v1213 = vadd.f32 %v164, %v1212
    %v1214 = vpop.f32.mrf.mxu0
    %v1215 = vadd.f32 %v168, %v1214
    %v1216 = vpop.f32.mrf.mxu0
    %v1217 = vadd.f32 %v164, %v1216
    %v1218 = vpop.f32.mrf.mxu0
    %v1219 = vadd.f32 %v168, %v1218
    %1220 = vmatprep.mubr.bf16.mxu0 0
    %1221 = vmatmul.mubr.bf16.gmra.mxu0 %v332
    %v1222 = vpop.f32.mrf.mxu0
    %v1223 = vadd.f32 %v164, %v1222
    %v1224 = vpop.f32.mrf.mxu0
    %v1225 = vadd.f32 %v168, %v1224
    %v1226 = vpop.f32.mrf.mxu0
    %v1227 = vadd.f32 %v164, %v1226
    %v1228 = vpop.f32.mrf.mxu0
    %v1229 = vadd.f32 %v168, %v1228
    %1230 = vdwg.mxu0
    %1231 = vst [vmem:[#allocation8] sm:$0xff] %v560
    %1232 = vst [vmem:[#allocation8 + $0x8] sm:$0xff] %v562
    %1233 = vst [vmem:[#allocation8 + $0x10] sm:$0xff] %v913
    %1234 = vst [vmem:[#allocation8 + $0x18] sm:$0xff] %v915
    %1235 = vst [vmem:[#allocation8 + $0x20] sm:$0xff] %v564
    %1236 = vst [vmem:[#allocation8 + $0x28] sm:$0xff] %v566
    %1237 = vst [vmem:[#allocation8 + $0x30] sm:$0xff] %v917
    %1238 = vst [vmem:[#allocation8 + $0x38] sm:$0xff] %v919
    %1239 = vst [vmem:[#allocation8 + $0x40] sm:$0xff] %v570
    %1240 = vst [vmem:[#allocation8 + $0x48] sm:$0xff] %v572
    %1241 = vst [vmem:[#allocation8 + $0x50] sm:$0xff] %v923
    %1242 = vst [vmem:[#allocation8 + $0x58] sm:$0xff] %v925
    %1243 = vst [vmem:[#allocation8 + $0x60] sm:$0xff] %v574
    %1244 = vst [vmem:[#allocation8 + $0x68] sm:$0xff] %v576
    %1245 = vst [vmem:[#allocation8 + $0x70] sm:$0xff] %v927
    %1246 = vst [vmem:[#allocation8 + $0x78] sm:$0xff] %v929
    %1247 = vst [vmem:[#allocation8 + $0x80] sm:$0xff] %v580
    %1248 = vst [vmem:[#allocation8 + $0x88] sm:$0xff] %v582
    %1249 = vst [vmem:[#allocation8 + $0x90] sm:$0xff] %v933
    %1250 = vst [vmem:[#allocation8 + $0x98] sm:$0xff] %v935
    %1251 = vst [vmem:[#allocation8 + $0xa0] sm:$0xff] %v584
    %1252 = vst [vmem:[#allocation8 + $0xa8] sm:$0xff] %v586
    %1253 = vst [vmem:[#allocation8 + $0xb0] sm:$0xff] %v937
    %1254 = vst [vmem:[#allocation8 + $0xb8] sm:$0xff] %v939
    %1255 = vst [vmem:[#allocation8 + $0xc0] sm:$0xff] %v590
    %1256 = vst [vmem:[#allocation8 + $0xc8] sm:$0xff] %v592
    %1257 = vst [vmem:[#allocation8 + $0xd0] sm:$0xff] %v943
    %1258 = vst [vmem:[#allocation8 + $0xd8] sm:$0xff] %v945
    %1259 = vst [vmem:[#allocation8 + $0xe0] sm:$0xff] %v594
    %1260 = vst [vmem:[#allocation8 + $0xe8] sm:$0xff] %v596
    %1261 = vst [vmem:[#allocation8 + $0xf0] sm:$0xff] %v947
    %1262 = vst [vmem:[#allocation8 + $0xf8] sm:$0xff] %v949
    %1263 = vst [vmem:[#allocation8 + $0x100] sm:$0xff] %v600
    %1264 = vst [vmem:[#allocation8 + $0x108] sm:$0xff] %v602
    %1265 = vst [vmem:[#allocation8 + $0x110] sm:$0xff] %v953
    %1266 = vst [vmem:[#allocation8 + $0x118] sm:$0xff] %v955
    %1267 = vst [vmem:[#allocation8 + $0x120] sm:$0xff] %v604
    %1268 = vst [vmem:[#allocation8 + $0x128] sm:$0xff] %v606
    %1269 = vst [vmem:[#allocation8 + $0x130] sm:$0xff] %v957
    %1270 = vst [vmem:[#allocation8 + $0x138] sm:$0xff] %v959
    %1271 = vst [vmem:[#allocation8 + $0x140] sm:$0xff] %v610
    %1272 = vst [vmem:[#allocation8 + $0x148] sm:$0xff] %v612
    %1273 = vst [vmem:[#allocation8 + $0x150] sm:$0xff] %v963
    %1274 = vst [vmem:[#allocation8 + $0x158] sm:$0xff] %v965
    %1275 = vst [vmem:[#allocation8 + $0x160] sm:$0xff] %v614
    %1276 = vst [vmem:[#allocation8 + $0x168] sm:$0xff] %v616
    %1277 = vst [vmem:[#allocation8 + $0x170] sm:$0xff] %v967
    %1278 = vst [vmem:[#allocation8 + $0x178] sm:$0xff] %v969
    %1279 = vst [vmem:[#allocation8 + $0x180] sm:$0xff] %v620
    %1280 = vst [vmem:[#allocation8 + $0x188] sm:$0xff] %v622
    %1281 = vst [vmem:[#allocation8 + $0x190] sm:$0xff] %v973
    %1282 = vst [vmem:[#allocation8 + $0x198] sm:$0xff] %v975
    %1283 = vst [vmem:[#allocation8 + $0x1a0] sm:$0xff] %v624
    %1284 = vst [vmem:[#allocation8 + $0x1a8] sm:$0xff] %v626
    %1285 = vst [vmem:[#allocation8 + $0x1b0] sm:$0xff] %v977
    %1286 = vst [vmem:[#allocation8 + $0x1b8] sm:$0xff] %v979
    %1287 = vst [vmem:[#allocation8 + $0x1c0] sm:$0xff] %v630
    %1288 = vst [vmem:[#allocation8 + $0x1c8] sm:$0xff] %v632
    %1289 = vst [vmem:[#allocation8 + $0x1d0] sm:$0xff] %v983
    %1290 = vst [vmem:[#allocation8 + $0x1d8] sm:$0xff] %v985
    %1291 = vst [vmem:[#allocation8 + $0x1e0] sm:$0xff] %v634
    %1292 = vst [vmem:[#allocation8 + $0x1e8] sm:$0xff] %v636
    %1293 = vst [vmem:[#allocation8 + $0x1f0] sm:$0xff] %v987
    %1294 = vst [vmem:[#allocation8 + $0x1f8] sm:$0xff] %v989
    %1295 = vst [vmem:[#allocation8 + $0x200] sm:$0xff] %v640
    %1296 = vst [vmem:[#allocation8 + $0x208] sm:$0xff] %v642
    %1297 = vst [vmem:[#allocation8 + $0x210] sm:$0xff] %v993
    %1298 = vst [vmem:[#allocation8 + $0x218] sm:$0xff] %v995
    %1299 = vst [vmem:[#allocation8 + $0x220] sm:$0xff] %v644
    %1300 = vst [vmem:[#allocation8 + $0x228] sm:$0xff] %v646
    %1301 = vst [vmem:[#allocation8 + $0x230] sm:$0xff] %v997
    %1302 = vst [vmem:[#allocation8 + $0x238] sm:$0xff] %v999
    %1303 = vst [vmem:[#allocation8 + $0x240] sm:$0xff] %v650
    %1304 = vst [vmem:[#allocation8 + $0x248] sm:$0xff] %v652
    %1305 = vst [vmem:[#allocation8 + $0x250] sm:$0xff] %v1003
    %1306 = vst [vmem:[#allocation8 + $0x258] sm:$0xff] %v1005
    %1307 = vst [vmem:[#allocation8 + $0x260] sm:$0xff] %v654
    %1308 = vst [vmem:[#allocation8 + $0x268] sm:$0xff] %v656
    %1309 = vst [vmem:[#allocation8 + $0x270] sm:$0xff] %v1007
    %1310 = vst [vmem:[#allocation8 + $0x278] sm:$0xff] %v1009
    %1311 = vst [vmem:[#allocation8 + $0x280] sm:$0xff] %v660
    %1312 = vst [vmem:[#allocation8 + $0x288] sm:$0xff] %v662
    %1313 = vst [vmem:[#allocation8 + $0x290] sm:$0xff] %v1013
    %1314 = vst [vmem:[#allocation8 + $0x298] sm:$0xff] %v1015
    %1315 = vst [vmem:[#allocation8 + $0x2a0] sm:$0xff] %v664
    %1316 = vst [vmem:[#allocation8 + $0x2a8] sm:$0xff] %v666
    %1317 = vst [vmem:[#allocation8 + $0x2b0] sm:$0xff] %v1017
    %1318 = vst [vmem:[#allocation8 + $0x2b8] sm:$0xff] %v1019
    %1319 = vst [vmem:[#allocation8 + $0x2c0] sm:$0xff] %v670
    %1320 = vst [vmem:[#allocation8 + $0x2c8] sm:$0xff] %v672
    %1321 = vst [vmem:[#allocation8 + $0x2d0] sm:$0xff] %v1023
    %1322 = vst [vmem:[#allocation8 + $0x2d8] sm:$0xff] %v1025
    %1323 = vst [vmem:[#allocation8 + $0x2e0] sm:$0xff] %v674
    %1324 = vst [vmem:[#allocation8 + $0x2e8] sm:$0xff] %v676
    %1325 = vst [vmem:[#allocation8 + $0x2f0] sm:$0xff] %v1027
    %1326 = vst [vmem:[#allocation8 + $0x2f8] sm:$0xff] %v1029
    %1327 = vst [vmem:[#allocation8 + $0x300] sm:$0xff] %v680
    %1328 = vst [vmem:[#allocation8 + $0x308] sm:$0xff] %v682
    %1329 = vst [vmem:[#allocation8 + $0x310] sm:$0xff] %v1033
    %1330 = vst [vmem:[#allocation8 + $0x318] sm:$0xff] %v1035
    %1331 = vst [vmem:[#allocation8 + $0x320] sm:$0xff] %v684
    %1332 = vst [vmem:[#allocation8 + $0x328] sm:$0xff] %v686
    %1333 = vst [vmem:[#allocation8 + $0x330] sm:$0xff] %v1037
    %1334 = vst [vmem:[#allocation8 + $0x338] sm:$0xff] %v1039
    %1335 = vst [vmem:[#allocation8 + $0x340] sm:$0xff] %v690
    %1336 = vst [vmem:[#allocation8 + $0x348] sm:$0xff] %v692
    %1337 = vst [vmem:[#allocation8 + $0x350] sm:$0xff] %v1043
    %1338 = vst [vmem:[#allocation8 + $0x358] sm:$0xff] %v1045
    %1339 = vst [vmem:[#allocation8 + $0x360] sm:$0xff] %v694
    %1340 = vst [vmem:[#allocation8 + $0x368] sm:$0xff] %v696
    %1341 = vst [vmem:[#allocation8 + $0x370] sm:$0xff] %v1047
    %1342 = vst [vmem:[#allocation8 + $0x378] sm:$0xff] %v1049
    %1343 = vst [vmem:[#allocation8 + $0x380] sm:$0xff] %v700
    %1344 = vst [vmem:[#allocation8 + $0x388] sm:$0xff] %v702
    %1345 = vst [vmem:[#allocation8 + $0x390] sm:$0xff] %v1053
    %1346 = vst [vmem:[#allocation8 + $0x398] sm:$0xff] %v1055
    %1347 = vst [vmem:[#allocation8 + $0x3a0] sm:$0xff] %v704
    %1348 = vst [vmem:[#allocation8 + $0x3a8] sm:$0xff] %v706
    %1349 = vst [vmem:[#allocation8 + $0x3b0] sm:$0xff] %v1057
    %1350 = vst [vmem:[#allocation8 + $0x3b8] sm:$0xff] %v1059
    %1351 = vst [vmem:[#allocation8 + $0x3c0] sm:$0xff] %v710
    %1352 = vst [vmem:[#allocation8 + $0x3c8] sm:$0xff] %v712
    %1353 = vst [vmem:[#allocation8 + $0x3d0] sm:$0xff] %v1063
    %1354 = vst [vmem:[#allocation8 + $0x3d8] sm:$0xff] %v1065
    %1355 = vst [vmem:[#allocation8 + $0x3e0] sm:$0xff] %v714
    %1356 = vst [vmem:[#allocation8 + $0x3e8] sm:$0xff] %v716
    %1357 = vst [vmem:[#allocation8 + $0x3f0] sm:$0xff] %v1067
    %1358 = vst [vmem:[#allocation8 + $0x3f8] sm:$0xff] %v1069
    %1359 = vst [vmem:[#allocation8 + $0x400] sm:$0xff] %v720
    %1360 = vst [vmem:[#allocation8 + $0x408] sm:$0xff] %v722
    %1361 = vst [vmem:[#allocation8 + $0x410] sm:$0xff] %v1073
    %1362 = vst [vmem:[#allocation8 + $0x418] sm:$0xff] %v1075
    %1363 = vst [vmem:[#allocation8 + $0x420] sm:$0xff] %v724
    %1364 = vst [vmem:[#allocation8 + $0x428] sm:$0xff] %v726
    %1365 = vst [vmem:[#allocation8 + $0x430] sm:$0xff] %v1077
    %1366 = vst [vmem:[#allocation8 + $0x438] sm:$0xff] %v1079
    %1367 = vst [vmem:[#allocation8 + $0x440] sm:$0xff] %v730
    %1368 = vst [vmem:[#allocation8 + $0x448] sm:$0xff] %v732
    %1369 = vst [vmem:[#allocation8 + $0x450] sm:$0xff] %v1083
    %1370 = vst [vmem:[#allocation8 + $0x458] sm:$0xff] %v1085
    %1371 = vst [vmem:[#allocation8 + $0x460] sm:$0xff] %v734
    %1372 = vst [vmem:[#allocation8 + $0x468] sm:$0xff] %v736
    %1373 = vst [vmem:[#allocation8 + $0x470] sm:$0xff] %v1087
    %1374 = vst [vmem:[#allocation8 + $0x478] sm:$0xff] %v1089
    %1375 = vst [vmem:[#allocation8 + $0x480] sm:$0xff] %v740
    %1376 = vst [vmem:[#allocation8 + $0x488] sm:$0xff] %v742
    %1377 = vst [vmem:[#allocation8 + $0x490] sm:$0xff] %v1093
    %1378 = vst [vmem:[#allocation8 + $0x498] sm:$0xff] %v1095
    %1379 = vst [vmem:[#allocation8 + $0x4a0] sm:$0xff] %v744
    %1380 = vst [vmem:[#allocation8 + $0x4a8] sm:$0xff] %v746
    %1381 = vst [vmem:[#allocation8 + $0x4b0] sm:$0xff] %v1097
    %1382 = vst [vmem:[#allocation8 + $0x4b8] sm:$0xff] %v1099
    %1383 = vst [vmem:[#allocation8 + $0x4c0] sm:$0xff] %v750
    %1384 = vst [vmem:[#allocation8 + $0x4c8] sm:$0xff] %v752
    %1385 = vst [vmem:[#allocation8 + $0x4d0] sm:$0xff] %v1103
    %1386 = vst [vmem:[#allocation8 + $0x4d8] sm:$0xff] %v1105
    %1387 = vst [vmem:[#allocation8 + $0x4e0] sm:$0xff] %v754
    %1388 = vst [vmem:[#allocation8 + $0x4e8] sm:$0xff] %v756
    %1389 = vst [vmem:[#allocation8 + $0x4f0] sm:$0xff] %v1107
    %1390 = vst [vmem:[#allocation8 + $0x4f8] sm:$0xff] %v1109
    %1391 = vst [vmem:[#allocation8 + $0x500] sm:$0xff] %v760
    %1392 = vst [vmem:[#allocation8 + $0x508] sm:$0xff] %v762
    %1393 = vst [vmem:[#allocation8 + $0x510] sm:$0xff] %v1113
    %1394 = vst [vmem:[#allocation8 + $0x518] sm:$0xff] %v1115
    %1395 = vst [vmem:[#allocation8 + $0x520] sm:$0xff] %v764
    %1396 = vst [vmem:[#allocation8 + $0x528] sm:$0xff] %v766
    %1397 = vst [vmem:[#allocation8 + $0x530] sm:$0xff] %v1117
    %1398 = vst [vmem:[#allocation8 + $0x538] sm:$0xff] %v1119
    %1399 = vst [vmem:[#allocation8 + $0x540] sm:$0xff] %v770
    %1400 = vst [vmem:[#allocation8 + $0x548] sm:$0xff] %v772
    %1401 = vst [vmem:[#allocation8 + $0x550] sm:$0xff] %v1123
    %1402 = vst [vmem:[#allocation8 + $0x558] sm:$0xff] %v1125
    %1403 = vst [vmem:[#allocation8 + $0x560] sm:$0xff] %v774
    %1404 = vst [vmem:[#allocation8 + $0x568] sm:$0xff] %v776
    %1405 = vst [vmem:[#allocation8 + $0x570] sm:$0xff] %v1127
    %1406 = vst [vmem:[#allocation8 + $0x578] sm:$0xff] %v1129
    %1407 = vst [vmem:[#allocation8 + $0x580] sm:$0xff] %v780
    %1408 = vst [vmem:[#allocation8 + $0x588] sm:$0xff] %v782
    %1409 = vst [vmem:[#allocation8 + $0x590] sm:$0xff] %v1133
    %1410 = vst [vmem:[#allocation8 + $0x598] sm:$0xff] %v1135
    %1411 = vst [vmem:[#allocation8 + $0x5a0] sm:$0xff] %v784
    %1412 = vst [vmem:[#allocation8 + $0x5a8] sm:$0xff] %v786
    %1413 = vst [vmem:[#allocation8 + $0x5b0] sm:$0xff] %v1137
    %1414 = vst [vmem:[#allocation8 + $0x5b8] sm:$0xff] %v1139
    %1415 = vst [vmem:[#allocation8 + $0x5c0] sm:$0xff] %v790
    %1416 = vst [vmem:[#allocation8 + $0x5c8] sm:$0xff] %v792
    %1417 = vst [vmem:[#allocation8 + $0x5d0] sm:$0xff] %v1143
    %1418 = vst [vmem:[#allocation8 + $0x5d8] sm:$0xff] %v1145
    %1419 = vst [vmem:[#allocation8 + $0x5e0] sm:$0xff] %v794
    %1420 = vst [vmem:[#allocation8 + $0x5e8] sm:$0xff] %v796
    %1421 = vst [vmem:[#allocation8 + $0x5f0] sm:$0xff] %v1147
    %1422 = vst [vmem:[#allocation8 + $0x5f8] sm:$0xff] %v1149
    %1423 = vst [vmem:[#allocation8 + $0x600] sm:$0xff] %v800
    %1424 = vst [vmem:[#allocation8 + $0x608] sm:$0xff] %v802
    %1425 = vst [vmem:[#allocation8 + $0x610] sm:$0xff] %v1153
    %1426 = vst [vmem:[#allocation8 + $0x618] sm:$0xff] %v1155
    %1427 = vst [vmem:[#allocation8 + $0x620] sm:$0xff] %v804
    %1428 = vst [vmem:[#allocation8 + $0x628] sm:$0xff] %v806
    %1429 = vst [vmem:[#allocation8 + $0x630] sm:$0xff] %v1157
    %1430 = vst [vmem:[#allocation8 + $0x638] sm:$0xff] %v1159
    %1431 = vst [vmem:[#allocation8 + $0x640] sm:$0xff] %v810
    %1432 = vst [vmem:[#allocation8 + $0x648] sm:$0xff] %v812
    %1433 = vst [vmem:[#allocation8 + $0x650] sm:$0xff] %v1163
    %1434 = vst [vmem:[#allocation8 + $0x658] sm:$0xff] %v1165
    %1435 = vst [vmem:[#allocation8 + $0x660] sm:$0xff] %v814
    %1436 = vst [vmem:[#allocation8 + $0x668] sm:$0xff] %v816
    %1437 = vst [vmem:[#allocation8 + $0x670] sm:$0xff] %v1167
    %1438 = vst [vmem:[#allocation8 + $0x678] sm:$0xff] %v1169
    %1439 = vst [vmem:[#allocation8 + $0x680] sm:$0xff] %v820
    %1440 = vst [vmem:[#allocation8 + $0x688] sm:$0xff] %v822
    %1441 = vst [vmem:[#allocation8 + $0x690] sm:$0xff] %v1173
    %1442 = vst [vmem:[#allocation8 + $0x698] sm:$0xff] %v1175
    %1443 = vst [vmem:[#allocation8 + $0x6a0] sm:$0xff] %v824
    %1444 = vst [vmem:[#allocation8 + $0x6a8] sm:$0xff] %v826
    %1445 = vst [vmem:[#allocation8 + $0x6b0] sm:$0xff] %v1177
    %1446 = vst [vmem:[#allocation8 + $0x6b8] sm:$0xff] %v1179
    %1447 = vst [vmem:[#allocation8 + $0x6c0] sm:$0xff] %v830
    %1448 = vst [vmem:[#allocation8 + $0x6c8] sm:$0xff] %v832
    %1449 = vst [vmem:[#allocation8 + $0x6d0] sm:$0xff] %v1183
    %1450 = vst [vmem:[#allocation8 + $0x6d8] sm:$0xff] %v1185
    %1451 = vst [vmem:[#allocation8 + $0x6e0] sm:$0xff] %v834
    %1452 = vst [vmem:[#allocation8 + $0x6e8] sm:$0xff] %v836
    %1453 = vst [vmem:[#allocation8 + $0x6f0] sm:$0xff] %v1187
    %1454 = vst [vmem:[#allocation8 + $0x6f8] sm:$0xff] %v1189
    %1455 = vst [vmem:[#allocation8 + $0x700] sm:$0xff] %v840
    %1456 = vst [vmem:[#allocation8 + $0x708] sm:$0xff] %v842
    %1457 = vst [vmem:[#allocation8 + $0x710] sm:$0xff] %v1193
    %1458 = vst [vmem:[#allocation8 + $0x718] sm:$0xff] %v1195
    %1459 = vst [vmem:[#allocation8 + $0x720] sm:$0xff] %v844
    %1460 = vst [vmem:[#allocation8 + $0x728] sm:$0xff] %v846
    %1461 = vst [vmem:[#allocation8 + $0x730] sm:$0xff] %v1197
    %1462 = vst [vmem:[#allocation8 + $0x738] sm:$0xff] %v1199
    %1463 = vst [vmem:[#allocation8 + $0x740] sm:$0xff] %v850
    %1464 = vst [vmem:[#allocation8 + $0x748] sm:$0xff] %v852
    %1465 = vst [vmem:[#allocation8 + $0x750] sm:$0xff] %v1203
    %1466 = vst [vmem:[#allocation8 + $0x758] sm:$0xff] %v1205
    %1467 = vst [vmem:[#allocation8 + $0x760] sm:$0xff] %v854
    %1468 = vst [vmem:[#allocation8 + $0x768] sm:$0xff] %v856
    %1469 = vst [vmem:[#allocation8 + $0x770] sm:$0xff] %v1207
    %1470 = vst [vmem:[#allocation8 + $0x778] sm:$0xff] %v1209
    %1471 = vst [vmem:[#allocation8 + $0x780] sm:$0xff] %v860
    %1472 = vst [vmem:[#allocation8 + $0x788] sm:$0xff] %v862
    %1473 = vst [vmem:[#allocation8 + $0x790] sm:$0xff] %v1213
    %1474 = vst [vmem:[#allocation8 + $0x798] sm:$0xff] %v1215
    %1475 = vst [vmem:[#allocation8 + $0x7a0] sm:$0xff] %v864
    %1476 = vst [vmem:[#allocation8 + $0x7a8] sm:$0xff] %v866
    %1477 = vst [vmem:[#allocation8 + $0x7b0] sm:$0xff] %v1217
    %1478 = vst [vmem:[#allocation8 + $0x7b8] sm:$0xff] %v1219
    %1479 = vst [vmem:[#allocation8 + $0x7c0] sm:$0xff] %v870
    %1480 = vst [vmem:[#allocation8 + $0x7c8] sm:$0xff] %v872
    %1481 = vst [vmem:[#allocation8 + $0x7d0] sm:$0xff] %v1223
    %1482 = vst [vmem:[#allocation8 + $0x7d8] sm:$0xff] %v1225
    %1483 = vst [vmem:[#allocation8 + $0x7e0] sm:$0xff] %v874
    %1484 = vst [vmem:[#allocation8 + $0x7e8] sm:$0xff] %v876
    %1485 = vst [vmem:[#allocation8 + $0x7f0] sm:$0xff] %v1227
    %1486 = vst [vmem:[#allocation8 + $0x7f8] sm:$0xff] %v1229
    // Predicated region
    $region26: #{tpu_custom_call.1} parent=1 // pred_check
      _
    $region27: #{tpu_custom_call.1} parent=1 // pred_check_branch
      %1488 = sbr.rel (0) target = $region29
    $region28: #{tpu_custom_call.1} parent=1 // pred_region
      %s1490 = ssub.s32 32768, 32768
      %1491 = vsyncadd [#allocation4], %s1490
      %s1492 = sshll.u32 [#allocation8], 4
      %s1493 = int_to_ptr.vmem [resolvable:$true] %s1492
      %1498 = dma.vmem_to_hbm [thread:$0]  %s1493, 32768, %s3, [#allocation4], 512, 512, 32
    $region29: #{tpu_custom_call.1} parent=1 // pred_fallthru
      _
    // Predicated region
    $region30: #{tpu_custom_call.1} parent=1 // pred_check
      _
    $region31: #{tpu_custom_call.1} parent=1 // pred_check_branch
      %1500 = sbr.rel (0) target = $region33
    $region32: #{tpu_custom_call.1} parent=1 // pred_region
      %1501 = dma.done [#allocation4], 32768
    $region33: #{tpu_custom_call.1} parent=1 // pred_fallthru
      _
    %1502 = vsyncpa [#allocation3], 1
    %1503 = vsyncpa [#allocation6], 1
    %1504 = vsyncpa [#allocation4], 1

</llo_original>
